<compile_context>
chip_gen: v6e
topology: v6e:2x2x1
jax: 0.10.0
libtpu: 0.0.40
codegen_flags: <defaults>
</compile_context>

<pallas_src>
import jax
import jax.numpy as jnp
from jax.experimental import pallas as pl
from jax.experimental.pallas import tpu as pltpu


def _mlp_kernel(x_ref, w_ref, b_ref, o_ref):
    # Single fused linear: (TB, 8) @ (8, 128) + (1, 128), then store only the
    # first C lanes (masked vst; store slot has huge slack in this kernel).
    c = o_ref.shape[-1]
    y = (
        jnp.dot(x_ref[...], w_ref[...], preferred_element_type=jnp.float32)
        + b_ref[...]
    )
    o_ref[...] = y[:, :c].astype(o_ref.dtype)


def net_forward(x, w1, b1, w2, b2, *, block_b=4096):
    """Pallas implementation of fc2(fc1(x)).

    x : (B, 8) float32
    w1: (8, 4)  (transposed Linear(8,4) weight)   b1: (1, 4)
    w2: (4, C)  (transposed Linear(4,C) weight)   b2: (1, C)
    returns (B, C) float32
    """
    B = x.shape[0]
    C = w2.shape[1]

    # --- Fold the two linear layers (no nonlinearity between them). ---
    w = w1 @ w2                      # (8, C)
    bias = b1 @ w2 + b2              # (1, C)

    # --- Pad ONLY the (tiny) weight/bias lane dim to 128 for the MXU. ---
    c_pad = max(128, ((C + 127) // 128) * 128)
    w_p = jnp.zeros((8, c_pad), jnp.float32).at[:, :C].set(w)
    b_p = jnp.zeros((1, c_pad), jnp.float32).at[:, :C].set(bias)

    # --- Batch tile: big tiles amortize per-step overhead; no pad copy, the
    #     ragged tail block (if any) is masked by Pallas automatically. ---
    tb = min(block_b, ((B + 7) // 8) * 8)
    grid = (pl.cdiv(B, tb),)

    out = pl.pallas_call(
        _mlp_kernel,
        out_shape=jax.ShapeDtypeStruct((B, C), jnp.float32),
        grid=grid,
        in_specs=[
            pl.BlockSpec((tb, 8), lambda i: (i, 0)),      # x tile, pipelined over batch
            pl.BlockSpec((8, c_pad), lambda i: (0, 0)),   # folded weight, VMEM-resident
            pl.BlockSpec((1, c_pad), lambda i: (0, 0)),   # folded bias, VMEM-resident
        ],
        out_specs=pl.BlockSpec((tb, C), lambda i: (i, 0)),  # full last dim -> no lane padding in HBM
        compiler_params=pltpu.CompilerParams(
            dimension_semantics=("parallel",),            # 2 TCs on v7x; no-op on v5e/v6e
        ),
        cost_estimate=pl.CostEstimate(
            flops=2 * B * 8 * c_pad,
            transcendentals=0,
            bytes_accessed=B * 8 * 4 + 8 * c_pad * 4 + c_pad * 4 + B * C * 4,
        ),
    )(x, w_p, b_p)

    return out


def init_params(key, num_class=10):
    """Deterministic init matching nn.Linear's default U(-1/sqrt(fan_in), 1/sqrt(fan_in))."""
    k1, k2, k3, k4 = jax.random.split(key, 4)
    bound1 = 1.0 / jnp.sqrt(8.0)
    bound2 = 1.0 / jnp.sqrt(4.0)
    # Stored as (in, out) — i.e. PyTorch weight.T — so no transposes are needed.
    w1 = jax.random.uniform(k1, (8, 4), jnp.float32, -bound1, bound1)
    b1 = jax.random.uniform(k2, (1, 4), jnp.float32, -bound1, bound1)
    w2 = jax.random.uniform(k3, (4, num_class), jnp.float32, -bound2, bound2)
    b2 = jax.random.uniform(k4, (1, num_class), jnp.float32, -bound2, bound2)
    return w1, b1, w2, b2


if __name__ == "__main__":
    key = jax.random.PRNGKey(0)
    pkey, xkey = jax.random.split(key)
    w1, b1, w2, b2 = init_params(pkey, num_class=10)

    batch = 8
    x = jax.random.normal(xkey, (batch, 8), jnp.float32)

    out = net_forward(x, w1, b1, w2, b2)
    out = jax.block_until_ready(out)

    # Reference: the original two-layer form (kernel uses the algebraically
    # identical folded form; fp rounding order differs slightly).
    ref = (x @ w1 + b1) @ w2 + b2
    assert out.shape == (batch, 10)
    assert jnp.allclose(out, ref, atol=1e-5, rtol=1e-4)

    print("KERNEL_OK")
</pallas_src>

<mosaic_0001>
module attributes {stable_mosaic.version = 11 : i64} {
  func.func @_mlp_kernel(%arg0: i32, %arg1: memref<8x8xf32, #tpu.memory_space<vmem>>, %arg2: memref<8x128xf32, #tpu.memory_space<vmem>>, %arg3: memref<1x128xf32, #tpu.memory_space<vmem>>, %arg4: memref<8x10xf32, #tpu.memory_space<vmem>>) attributes {dimension_semantics = [#tpu.dimension_semantics<parallel>], iteration_bounds = array<i64: 1>, scalar_prefetch = 0 : i64, scratch_operands = 0 : i64, tpu.core_type = #tpu.core_type<tc>, window_params = [{transform_indices = @transform_0, window_bounds = array<i64: 8, 8>}, {pipeline_mode = #tpu.pipeline_mode<synchronous>, transform_indices = @transform_1, window_bounds = array<i64: 8, 128>}, {pipeline_mode = #tpu.pipeline_mode<synchronous>, transform_indices = @transform_2, window_bounds = array<i64: 1, 128>}, {transform_indices = @transform_3, window_bounds = array<i64: 8, 10>}]} {
    %c0 = arith.constant 0 : index
    %c0_0 = arith.constant 0 : index
    %0 = vector.load %arg1[%c0, %c0_0] : memref<8x8xf32, #tpu.memory_space<vmem>>, vector<8x8xf32>
    %c0_1 = arith.constant 0 : index
    %c0_2 = arith.constant 0 : index
    %1 = vector.load %arg2[%c0_1, %c0_2] : memref<8x128xf32, #tpu.memory_space<vmem>>, vector<8x128xf32>
    %cst = arith.constant dense<0.000000e+00> : vector<8x128xf32>
    %2 = tpu.matmul %0, %1, %cst {dimension_numbers = #tpu.dot_dimension_numbers<[1], [0], [0], [1], [0, 0, 1, 1], [], []>} : vector<8x8xf32>, vector<8x128xf32>, vector<8x128xf32> -> vector<8x128xf32>
    %c0_3 = arith.constant 0 : index
    %c0_4 = arith.constant 0 : index
    %3 = vector.load %arg3[%c0_3, %c0_4] : memref<1x128xf32, #tpu.memory_space<vmem>>, vector<1x128xf32>
    %4 = vector.broadcast %3 : vector<1x128xf32> to vector<8x128xf32>
    %5 = arith.addf %2, %4 : vector<8x128xf32>
    %6 = vector.extract_strided_slice %5 {offsets = [0, 0], sizes = [8, 10], strides = [1, 1]} : vector<8x128xf32> to vector<8x10xf32>
    %c0_5 = arith.constant 0 : index
    %c0_6 = arith.constant 0 : index
    %7 = vector.load %arg4[%c0_5, %c0_6] : memref<8x10xf32, #tpu.memory_space<vmem>>, vector<8x10xf32>
    tpu.vector_store %arg4[%c0_5, %c0_6], %6 {strides = array<i32>} : memref<8x10xf32, #tpu.memory_space<vmem>>, vector<8x10xf32>,
    return
  }
  func.func @transform_0(%arg0: i32) -> (i32, i32) {
    %c0_i32 = arith.constant 0 : i32
    %c0_i32_0 = arith.constant 0 : i32
    return %arg0, %c0_i32 : i32, i32
  }
  func.func @transform_1(%arg0: i32) -> (i32, i32) {
    %c0_i32 = arith.constant 0 : i32
    %c0_i32_0 = arith.constant 0 : i32
    %c0_i32_1 = arith.constant 0 : i32
    return %c0_i32, %c0_i32_0 : i32, i32
  }
  func.func @transform_2(%arg0: i32) -> (i32, i32) {
    %c0_i32 = arith.constant 0 : i32
    %c0_i32_0 = arith.constant 0 : i32
    %c0_i32_1 = arith.constant 0 : i32
    return %c0_i32, %c0_i32_0 : i32, i32
  }
  func.func @transform_3(%arg0: i32) -> (i32, i32) {
    %c0_i32 = arith.constant 0 : i32
    %c0_i32_0 = arith.constant 0 : i32
    return %arg0, %c0_i32 : i32, i32
  }
}

</mosaic_0001>

<llo_original>
// kernel: tpu_custom_call.1
$region0: #{tpu_custom_call.1}
  #allocation0 [shape = 'u32[]', space=smem, size = 0x4, offset = 0x4, fixed_abs, tag = 'smem constant byte address 0x4 - core index']
  #allocation1 [shape = 'u32[144,128]{1,0:T(1,128)}', space=vmem, size = 0x12000, scoped, tag = 'internal scratch']
  %s0 = inlined_call_operand.hbm [shape: f32[8,8], index: 0, kind: input, shape index: {}]
  %s1 = inlined_call_operand.hbm [shape: f32[8,128], index: 1, kind: input, shape index: {}]
  %s2 = inlined_call_operand.vmem [shape: f32[1,128], index: 2, kind: input, shape index: {}]
  %s3 = inlined_call_operand.hbm [shape: f32[8,10], index: 3, kind: output, shape index: {}]
  %s4 = sld [smem:[#allocation0]]
  $region30: #{tpu_custom_call.1} parent=0
    _
  %s6 = ssub.s32 1, %s4
  %s7 = scalar_select 0, %s6, %s4
  $region1: #{tpu_custom_call.1} parent=0
    #allocation2 [shape = 'u8[4096]{0}', space=vmem, size = 0x1000, scoped, tag = 'input window, operand 0, single buffered']
    #allocation3 [shape = 's32[1]{0}', space=sflag, size = 0x4, scoped, tag = 'scoped memory for tpu_custom_call.1']
    #allocation4 [shape = 's32[1]{0}', space=sflag, size = 0x4, scoped, tag = 'scoped memory for tpu_custom_call.1']
    #allocation5 [shape = 'u8[4096]{0}', space=vmem, size = 0x1000, scoped, tag = 'input window, operand 1, single buffered']
    #allocation6 [shape = 's32[1]{0}', space=sflag, size = 0x4, scoped, tag = 'scoped memory for tpu_custom_call.1']
    #allocation7 [shape = 'u8[4096]{0}', space=vmem, size = 0x1000, scoped, tag = 'output window, operand 0, single buffered']
    %8 = vsyncpa [#allocation3], 0
    %9 = vsyncpa [#allocation6], 0
    %10 = vsyncpa [#allocation4], 0
    // Predicated region
    $region2: #{tpu_custom_call.1} parent=1 // pred_check
      _
    $region3: #{tpu_custom_call.1} parent=1 // pred_check_branch
      %12 = sbr.rel (0) target = $region5
    $region4: #{tpu_custom_call.1} parent=1 // pred_region
      %s14 = ssub.s32 128, 128
      %15 = vsyncadd [#allocation3], %s14
      %s17 = sshll.u32 [#allocation2], 4
      %s18 = int_to_ptr.vmem [resolvable:$true] %s17
      %20 = dma.hbm_to_vmem [thread:$0]  %s0, 128, %s18, [#allocation3]
    $region5: #{tpu_custom_call.1} parent=1 // pred_fallthru
      _
    // Predicated region
    $region6: #{tpu_custom_call.1} parent=1 // pred_check
      _
    $region7: #{tpu_custom_call.1} parent=1 // pred_check_branch
      %22 = sbr.rel (0) target = $region9
    $region8: #{tpu_custom_call.1} parent=1 // pred_region
      %s24 = ssub.s32 128, 128
      %25 = vsyncadd [#allocation6], %s24
      %s27 = sshll.u32 [#allocation5], 4
      %s28 = int_to_ptr.vmem [resolvable:$true] %s27
      %30 = dma.hbm_to_vmem [thread:$0]  %s1, 128, %s28, [#allocation6]
    $region9: #{tpu_custom_call.1} parent=1 // pred_fallthru
      _
    // Predicated region
    $region10: #{tpu_custom_call.1} parent=1 // pred_check
      _
    $region11: #{tpu_custom_call.1} parent=1 // pred_check_branch
      %32 = sbr.rel (0) target = $region13
    $region12: #{tpu_custom_call.1} parent=1 // pred_region
      _
    $region13: #{tpu_custom_call.1} parent=1 // pred_fallthru
      _
    // Predicated region
    $region14: #{tpu_custom_call.1} parent=1 // pred_check
      _
    $region15: #{tpu_custom_call.1} parent=1 // pred_check_branch
      %34 = sbr.rel (0) target = $region17
    $region16: #{tpu_custom_call.1} parent=1 // pred_region
      %35 = dma.done [#allocation3], 128
    $region17: #{tpu_custom_call.1} parent=1 // pred_fallthru
      _
    // Predicated region
    $region18: #{tpu_custom_call.1} parent=1 // pred_check
      _
    $region19: #{tpu_custom_call.1} parent=1 // pred_check_branch
      %37 = sbr.rel (0) target = $region21
    $region20: #{tpu_custom_call.1} parent=1 // pred_region
      %38 = dma.done [#allocation6], 128
    $region21: #{tpu_custom_call.1} parent=1 // pred_fallthru
      _
    %v39 = vld [vmem:[#allocation2] sm:$0xff]
    %v40 = vld [vmem:[#allocation5] sm:$0xff]
    %v41 = vld [vmem:[%s2] sm:$0x1]
    %v43 = vlaneseq
    %v44 = vshrl.u32 %v43, 7
    %v45 = vsub.s32 0, %v44
    %v46 = vrot.slane %v41, %v45
    %vm48 = vcmask 64512
    %v50 = vsel %vm48, %v39, 0
    %52 = vmatprep.subr.mxu0 0.0
    %53 = vmatpush1.msra.mxu0 0.0
    %54 = vmatprep.subr.mxu0 0.0
    %55 = vmatpush1.msra.mxu0 0.0
    %56 = vmatprep.subr.mxu0 0.0
    %57 = vmatpush1.msra.mxu0 0.0
    %58 = vmatprep.subr.mxu0 0.0
    %59 = vmatpush1.msra.mxu0 0.0
    %60 = vmatprep.subr.mxu0 0.0
    %61 = vmatpush1.msra.mxu0 0.0
    %62 = vmatprep.subr.mxu0 0.0
    %63 = vmatpush1.msra.mxu0 0.0
    %64 = vmatprep.subr.mxu0 0.0
    %65 = vmatpush1.msra.mxu0 0.0
    %66 = vmatprep.subr.mxu0 0.0
    %67 = vmatpush1.msra.mxu0 0.0
    %68 = vmatprep.subr.mxu0 0.0
    %69 = vmatpush1.msra.mxu0 0.0
    %70 = vmatprep.subr.mxu0 0.0
    %71 = vmatpush1.msra.mxu0 0.0
    %72 = vmatprep.subr.mxu0 0.0
    %73 = vmatpush1.msra.mxu0 0.0
    %74 = vmatprep.subr.mxu0 0.0
    %75 = vmatpush1.msra.mxu0 0.0
    %76 = vmatprep.subr.mxu0 0.0
    %77 = vmatpush1.msra.mxu0 0.0
    %78 = vmatprep.subr.mxu0 0.0
    %79 = vmatpush1.msra.mxu0 0.0
    %80 = vmatprep.subr.mxu0 0.0
    %81 = vmatpush1.msra.mxu0 0.0
    %82 = vmatprep.subr.mxu0 0.0
    %83 = vmatpush1.msra.mxu0 %v40
    %84 = vmatprep.subr.mxu0 0.0
    %85 = vmatpush2.msra.mxu0 0.0
    %86 = vmatprep.subr.mxu0 0.0
    %87 = vmatpush2.msra.mxu0 0.0
    %88 = vmatprep.subr.mxu0 0.0
    %89 = vmatpush2.msra.mxu0 0.0
    %90 = vmatprep.subr.mxu0 0.0
    %91 = vmatpush2.msra.mxu0 0.0
    %92 = vmatprep.subr.mxu0 0.0
    %93 = vmatpush2.msra.mxu0 0.0
    %94 = vmatprep.subr.mxu0 0.0
    %95 = vmatpush2.msra.mxu0 0.0
    %96 = vmatprep.subr.mxu0 0.0
    %97 = vmatpush2.msra.mxu0 0.0
    %98 = vmatprep.subr.mxu0 0.0
    %99 = vmatpush2.msra.mxu0 0.0
    %100 = vmatprep.subr.mxu0 0.0
    %101 = vmatpush2.msra.mxu0 0.0
    %102 = vmatprep.subr.mxu0 0.0
    %103 = vmatpush2.msra.mxu0 0.0
    %104 = vmatprep.subr.mxu0 0.0
    %105 = vmatpush2.msra.mxu0 0.0
    %106 = vmatprep.subr.mxu0 0.0
    %107 = vmatpush2.msra.mxu0 0.0
    %108 = vmatprep.subr.mxu0 0.0
    %109 = vmatpush2.msra.mxu0 0.0
    %110 = vmatprep.subr.mxu0 0.0
    %111 = vmatpush2.msra.mxu0 0.0
    %112 = vmatprep.subr.mxu0 0.0
    %113 = vmatpush2.msra.mxu0 0.0
    %114 = vmatprep.subr.mxu0 0.0
    %115 = vmatpush2.msra.mxu0 0.0
    %116 = vmatprep.mubr.f32.mxu0 0.0
    %117 = vmatmul.mubr.f32.gmra.mxu0 %v50
    %v118 = vpop.f32.mrf.mxu0
    %v119 = vadd.f32 %v46, %v118
    %v120 = vpop.f32.mrf.mxu0
    %121 = vdwg.mxu0
    %vm122 = vcmask 80896
    %123 = vst.msk [vmem:[#allocation7] sm:$0xff] %vm122, %v119
    // Predicated region
    $region22: #{tpu_custom_call.1} parent=1 // pred_check
      _
    $region23: #{tpu_custom_call.1} parent=1 // pred_check_branch
      %125 = sbr.rel (0) target = $region25
    $region24: #{tpu_custom_call.1} parent=1 // pred_region
      %s127 = ssub.s32 128, 128
      %128 = vsyncadd [#allocation4], %s127
      %s130 = sshll.u32 [#allocation7], 4
      %s131 = int_to_ptr.vmem [resolvable:$true] %s130
      %133 = dma.vmem_to_hbm [thread:$0]  %s131, 128, %s3, [#allocation4]
    $region25: #{tpu_custom_call.1} parent=1 // pred_fallthru
      _
    // Predicated region
    $region26: #{tpu_custom_call.1} parent=1 // pred_check
      _
    $region27: #{tpu_custom_call.1} parent=1 // pred_check_branch
      %135 = sbr.rel (0) target = $region29
    $region28: #{tpu_custom_call.1} parent=1 // pred_region
      %136 = dma.done [#allocation4], 128
    $region29: #{tpu_custom_call.1} parent=1 // pred_fallthru
      _
    %137 = vsyncpa [#allocation3], 1
    %138 = vsyncpa [#allocation6], 1
    %139 = vsyncpa [#allocation4], 1

</llo_original>
